<compile_context>
chip_gen: v7x
topology: tpu7x:2x2x1
jax: 0.10.0
libtpu: 0.0.40
codegen_flags: <defaults>
</compile_context>

<pallas_src>
import functools

import jax
import jax.numpy as jnp
from jax.experimental import pallas as pl
from jax.experimental.pallas import tpu as pltpu

_LANE = 128
_SUBLANE = 8


def _ceil_to(x, m):
    return ((x + m - 1) // m) * m


def _vmem_capacity_bytes():
    """VMEM capacity of the local TPU (128 MiB v5e/v6e, 64 MiB v7x)."""
    try:
        return int(pltpu.get_tpu_info().vmem_capacity_bytes)
    except Exception:
        return 64 * 1024 * 1024  # conservative v7x-sized default


def _patch_embed_kernel(x_ref, w_ref, b_ref, o_ref):
    # x_ref: (tm, Kp) patch rows (bf16, streamed); w_ref: (Kp, Ep) resident
    # weight (bf16); b_ref: (1, Ep) f32 bias; o_ref: (tm, Ep) output tile.
    acc = jnp.dot(x_ref[...], w_ref[...], preferred_element_type=jnp.float32)
    acc = acc + b_ref[...]                      # bias add kept in f32
    o_ref[...] = acc.astype(o_ref.dtype)


def prepare_patch_weights(weight, bias, *, compute_dtype=jnp.bfloat16):
    """Hoistable one-time prep: (E,C,P,P)+(E,) -> ((Kp,Ep) bf16, (1,Ep) f32)."""
    E, C, P, _ = weight.shape
    K = C * P * P
    Kp, Ep = _ceil_to(K, _LANE), _ceil_to(E, _LANE)
    w_mat = weight.reshape(E, K).T.astype(compute_dtype)        # (K, E)
    w_mat = jnp.pad(w_mat, ((0, Kp - K), (0, Ep - E)))          # (Kp, Ep)
    b_mat = jnp.pad(bias.astype(jnp.float32), (0, Ep - E)).reshape(1, Ep)
    return w_mat, b_mat


def _plan_tiles(M, Kp, Ep, cbytes, obytes, weight_buffers):
    """VMEM-budgeted M tile + scoped-vmem limit, generation aware."""
    cap = _vmem_capacity_bytes()
    budget = int(cap * 0.45)            # ~29 MiB on v7x, ~58 MiB on v5e/v6e
    weight_bytes = weight_buffers * (Kp * Ep * cbytes + Ep * 4)
    per_row = 2 * (Kp * cbytes + Ep * obytes)   # double-buffered x + out tiles
    avail = budget - weight_bytes
    if avail < per_row * _SUBLANE:
        raise ValueError(
            "Patch-embed weight (Kp=%d, Ep=%d) leaves no room for an 8-row "
            "tile in a %.0f MiB VMEM budget; tile K/E instead."
            % (Kp, Ep, budget / 2**20))
    tm = min(avail // per_row, 1024, M)
    if M <= _SUBLANE:
        tm = M
    elif tm >= M:
        # A single grid step would leave one v7x TensorCore idle: force >= 2
        # steps whenever M can be split on a sublane boundary.
        tm = _ceil_to(pl.cdiv(M, 2), _SUBLANE)
    elif tm >= _LANE:
        tm = (tm // _LANE) * _LANE      # keep large tiles MXU/128-aligned
    else:
        tm = max(_SUBLANE, (tm // _SUBLANE) * _SUBLANE)
    # Conservative estimate: count the weight double-buffered even when we
    # request Buffered(1), in case pipeline_mode is ignored by this build.
    vmem_needed = 2 * (Kp * Ep * cbytes + Ep * 4) + tm * per_row
    vmem_limit = int(min(cap * 85 // 100,
                         max(vmem_needed * 3 // 2,
                             vmem_needed + (8 << 20),
                             32 << 20)))
    return tm, vmem_limit


@functools.partial(
    jax.jit,
    static_argnames=("embed_dim", "patch_size", "compute_dtype", "out_dtype",
                     "single_buffer_weight"))
def _patch_embed_impl(x, w_mat, b_mat, *, embed_dim, patch_size, compute_dtype,
                      out_dtype, single_buffer_weight):
    B, C, H, W = x.shape
    P = patch_size
    assert H % P == 0 and W % P == 0
    Hp, Wp = H // P, W // P
    Np = Hp * Wp
    M = B * Np
    K = C * P * P
    Kp, Ep = w_mat.shape
    assert Kp == _ceil_to(K, _LANE) and Ep >= embed_dim

    # Patchify: cast + 6-D transpose + zero-pad K -> Kp.  Under jit this fuses
    # into a single XLA pass over x (read f32, write bf16 patches).
    # TODO(synk): fuse this im2col into the kernel to remove this round trip.
    patches = x.astype(compute_dtype).reshape(B, C, Hp, P, Wp, P)
    patches = jnp.transpose(patches, (0, 2, 4, 1, 3, 5)).reshape(M, K)
    if Kp != K:
        patches = jnp.pad(patches, ((0, 0), (0, Kp - K)))

    cbytes = jnp.dtype(compute_dtype).itemsize
    obytes = jnp.dtype(out_dtype).itemsize
    weight_buffers = 1 if single_buffer_weight else 2
    tm, vmem_limit = _plan_tiles(M, Kp, Ep, cbytes, obytes, weight_buffers)
    grid_m = pl.cdiv(M, tm)

    resident = dict(pipeline_mode=pl.Buffered(1)) if single_buffer_weight else {}
    out = pl.pallas_call(
        _patch_embed_kernel,
        out_shape=jax.ShapeDtypeStruct((M, Ep), out_dtype),
        grid_spec=pltpu.PrefetchScalarGridSpec(
            num_scalar_prefetch=0,
            grid=(grid_m,),
            in_specs=[
                pl.BlockSpec((tm, Kp), lambda i: (i, 0)),              # streamed
                pl.BlockSpec((Kp, Ep), lambda i: (0, 0), **resident),  # weight
                pl.BlockSpec((1, Ep), lambda i: (0, 0), **resident),   # bias
            ],
            out_specs=pl.BlockSpec((tm, Ep), lambda i: (i, 0)),
        ),
        compiler_params=pltpu.CompilerParams(
            dimension_semantics=("parallel",),   # dual-TensorCore on v7x
            vmem_limit_bytes=vmem_limit,
        ),
    )(patches, w_mat, b_mat)

    if Ep != embed_dim:
        out = out[:, :embed_dim]
    return out.reshape(B, Np, embed_dim)


def patch_embed_prepared(x, w_mat, b_mat, embed_dim, patch_size, *,
                         compute_dtype=jnp.bfloat16, out_dtype=None):
    """Patch embedding with pre-prepared (hoisted) weights."""
    out_dtype = compute_dtype if out_dtype is None else out_dtype
    try:
        return _patch_embed_impl(
            x, w_mat, b_mat, embed_dim=embed_dim, patch_size=patch_size,
            compute_dtype=compute_dtype, out_dtype=out_dtype,
            single_buffer_weight=True)
    except Exception:
        # pl.Buffered(1) (single-buffered resident weight) not supported by
        # this build: fall back to default double buffering (plan adjusts).
        return _patch_embed_impl(
            x, w_mat, b_mat, embed_dim=embed_dim, patch_size=patch_size,
            compute_dtype=compute_dtype, out_dtype=out_dtype,
            single_buffer_weight=False)


def patch_embed(x, weight, bias, patch_size, *, compute_dtype=jnp.bfloat16,
                out_dtype=None):
    """x: (B,C,H,W) NCHW; weight: (E,C,P,P); bias: (E,) -> (B, Np, E)."""
    w_mat, b_mat = prepare_patch_weights(weight, bias,
                                         compute_dtype=compute_dtype)
    return patch_embed_prepared(x, w_mat, b_mat, weight.shape[0], patch_size,
                                compute_dtype=compute_dtype,
                                out_dtype=out_dtype)


def reference_patch_embed(x, weight, bias, patch_size):
    # Pure-JAX reference (same math as nn.Conv2d with stride=kernel=P), f32.
    out = jax.lax.conv_general_dilated(
        x, weight,
        window_strides=(patch_size, patch_size),
        padding="VALID",
        dimension_numbers=("NCHW", "OIHW", "NCHW"),
    )
    out = out + bias.reshape(1, -1, 1, 1)
    B, E, Hp, Wp = out.shape
    return jnp.transpose(out.reshape(B, E, Hp * Wp), (0, 2, 1))


if __name__ == "__main__":
    # Small shapes consistent with the module:
    # img_size=16, patch_size=4, in_chans=4, embed_dim=32, batch=2
    B, C, H, W = 2, 4, 16, 16
    P = 4
    E = 32

    key = jax.random.PRNGKey(0)
    kx, kw, kb = jax.random.split(key, 3)
    x = jax.random.normal(kx, (B, C, H, W), dtype=jnp.float32)
    weight = jax.random.normal(kw, (E, C, P, P), dtype=jnp.float32) * 0.02
    bias = jax.random.normal(kb, (E,), dtype=jnp.float32) * 0.02

    # One-time weight prep, hoisted off the per-call path (review item).
    w_mat, b_mat = prepare_patch_weights(weight, bias)
    w_mat, b_mat = jax.block_until_ready((w_mat, b_mat))

    out = patch_embed_prepared(x, w_mat, b_mat, E, P)
    out = jax.block_until_ready(out)

    ref = reference_patch_embed(x, weight, bias, P)
    assert out.shape == (B, (H // P) * (W // P), E), out.shape
    assert out.dtype == jnp.bfloat16, out.dtype
    # bf16 activations/weights/output with f32 MXU accumulation vs the f32
    # conv reference -> loosened tolerance (explicit contract of this kernel).
    out_f32 = out.astype(jnp.float32)
    err = float(jnp.max(jnp.abs(out_f32 - ref)))
    assert jnp.allclose(out_f32, ref, atol=2e-2, rtol=2e-2), err

    print("KERNEL_OK")
</pallas_src>

<mosaic_0001>
module attributes {stable_mosaic.version = 11 : i64} {
  func.func @_patch_embed_kernel(%arg0: i32, %arg1: memref<16x128xbf16, #tpu.memory_space<vmem>>, %arg2: memref<128x128xbf16, #tpu.memory_space<vmem>>, %arg3: memref<1x128xf32, #tpu.memory_space<vmem>>, %arg4: memref<16x128xbf16, #tpu.memory_space<vmem>>) attributes {dimension_semantics = [#tpu.dimension_semantics<parallel>], iteration_bounds = array<i64: 2>, scalar_prefetch = 0 : i64, scratch_operands = 0 : i64, tpu.core_type = #tpu.core_type<tc>, window_params = [{transform_indices = @transform_0, window_bounds = array<i64: 16, 128>}, {pipeline_mode = #tpu.pipeline_mode<synchronous>, transform_indices = @transform_1, window_bounds = array<i64: 128, 128>}, {pipeline_mode = #tpu.pipeline_mode<synchronous>, transform_indices = @transform_2, window_bounds = array<i64: 1, 128>}, {transform_indices = @transform_3, window_bounds = array<i64: 16, 128>}]} {
    %c0 = arith.constant 0 : index
    %c0_0 = arith.constant 0 : index
    %0 = vector.load %arg1[%c0, %c0_0] : memref<16x128xbf16, #tpu.memory_space<vmem>>, vector<16x128xbf16>
    %c0_1 = arith.constant 0 : index
    %c0_2 = arith.constant 0 : index
    %1 = vector.load %arg2[%c0_1, %c0_2] : memref<128x128xbf16, #tpu.memory_space<vmem>>, vector<128x128xbf16>
    %cst = arith.constant dense<0.000000e+00> : vector<16x128xf32>
    %2 = tpu.matmul %0, %1, %cst {dimension_numbers = #tpu.dot_dimension_numbers<[1], [0], [0], [1], [0, 0, 1, 1], [], []>} : vector<16x128xbf16>, vector<128x128xbf16>, vector<16x128xf32> -> vector<16x128xf32>
    %c0_3 = arith.constant 0 : index
    %c0_4 = arith.constant 0 : index
    %3 = vector.load %arg3[%c0_3, %c0_4] : memref<1x128xf32, #tpu.memory_space<vmem>>, vector<1x128xf32>
    %4 = vector.broadcast %3 : vector<1x128xf32> to vector<16x128xf32>
    %5 = arith.addf %2, %4 : vector<16x128xf32>
    %6 = arith.truncf %5 : vector<16x128xf32> to vector<16x128xbf16>
    %c0_5 = arith.constant 0 : index
    %c0_6 = arith.constant 0 : index
    %7 = vector.load %arg4[%c0_5, %c0_6] : memref<16x128xbf16, #tpu.memory_space<vmem>>, vector<16x128xbf16>
    tpu.vector_store %arg4[%c0_5, %c0_6], %6 {strides = array<i32>} : memref<16x128xbf16, #tpu.memory_space<vmem>>, vector<16x128xbf16>,
    return
  }
  func.func @transform_0(%arg0: i32) -> (i32, i32) {
    %c0_i32 = arith.constant 0 : i32
    %c0_i32_0 = arith.constant 0 : i32
    return %arg0, %c0_i32 : i32, i32
  }
  func.func @transform_1(%arg0: i32) -> (i32, i32) {
    %c0_i32 = arith.constant 0 : i32
    %c0_i32_0 = arith.constant 0 : i32
    %c0_i32_1 = arith.constant 0 : i32
    return %c0_i32, %c0_i32_0 : i32, i32
  }
  func.func @transform_2(%arg0: i32) -> (i32, i32) {
    %c0_i32 = arith.constant 0 : i32
    %c0_i32_0 = arith.constant 0 : i32
    %c0_i32_1 = arith.constant 0 : i32
    return %c0_i32, %c0_i32_0 : i32, i32
  }
  func.func @transform_3(%arg0: i32) -> (i32, i32) {
    %c0_i32 = arith.constant 0 : i32
    %c0_i32_0 = arith.constant 0 : i32
    return %arg0, %c0_i32 : i32, i32
  }
}

module attributes {stable_mosaic.version = 11 : i64} {
  func.func @_patch_embed_kernel(%arg0: i32, %arg1: memref<16x128xbf16, #tpu.memory_space<vmem>>, %arg2: memref<128x128xbf16, #tpu.memory_space<vmem>>, %arg3: memref<1x128xf32, #tpu.memory_space<vmem>>, %arg4: memref<16x128xbf16, #tpu.memory_space<vmem>>) attributes {dimension_semantics = [#tpu.dimension_semantics<parallel>], iteration_bounds = array<i64: 2>, scalar_prefetch = 0 : i64, scratch_operands = 0 : i64, tpu.core_type = #tpu.core_type<tc>, window_params = [{transform_indices = @transform_0, window_bounds = array<i64: 16, 128>}, {pipeline_mode = #tpu.pipeline_mode<synchronous>, transform_indices = @transform_1, window_bounds = array<i64: 128, 128>}, {pipeline_mode = #tpu.pipeline_mode<synchronous>, transform_indices = @transform_2, window_bounds = array<i64: 1, 128>}, {transform_indices = @transform_3, window_bounds = array<i64: 16, 128>}]} {
    %c0 = arith.constant 0 : index
    %c0_0 = arith.constant 0 : index
    %0 = vector.load %arg1[%c0, %c0_0] : memref<16x128xbf16, #tpu.memory_space<vmem>>, vector<16x128xbf16>
    %c0_1 = arith.constant 0 : index
    %c0_2 = arith.constant 0 : index
    %1 = vector.load %arg2[%c0_1, %c0_2] : memref<128x128xbf16, #tpu.memory_space<vmem>>, vector<128x128xbf16>
    %cst = arith.constant dense<0.000000e+00> : vector<16x128xf32>
    %2 = tpu.matmul %0, %1, %cst {dimension_numbers = #tpu.dot_dimension_numbers<[1], [0], [0], [1], [0, 0, 1, 1], [], []>} : vector<16x128xbf16>, vector<128x128xbf16>, vector<16x128xf32> -> vector<16x128xf32>
    %c0_3 = arith.constant 0 : index
    %c0_4 = arith.constant 0 : index
    %3 = vector.load %arg3[%c0_3, %c0_4] : memref<1x128xf32, #tpu.memory_space<vmem>>, vector<1x128xf32>
    %4 = vector.broadcast %3 : vector<1x128xf32> to vector<16x128xf32>
    %5 = arith.addf %2, %4 : vector<16x128xf32>
    %6 = arith.truncf %5 : vector<16x128xf32> to vector<16x128xbf16>
    %c0_5 = arith.constant 0 : index
    %c0_6 = arith.constant 0 : index
    %7 = vector.load %arg4[%c0_5, %c0_6] : memref<16x128xbf16, #tpu.memory_space<vmem>>, vector<16x128xbf16>
    tpu.vector_store %arg4[%c0_5, %c0_6], %6 {strides = array<i32>} : memref<16x128xbf16, #tpu.memory_space<vmem>>, vector<16x128xbf16>,
    return
  }
  func.func @transform_0(%arg0: i32) -> (i32, i32) {
    %c0_i32 = arith.constant 0 : i32
    %c0_i32_0 = arith.constant 0 : i32
    return %arg0, %c0_i32 : i32, i32
  }
  func.func @transform_1(%arg0: i32) -> (i32, i32) {
    %c0_i32 = arith.constant 0 : i32
    %c0_i32_0 = arith.constant 0 : i32
    %c0_i32_1 = arith.constant 0 : i32
    return %c0_i32, %c0_i32_0 : i32, i32
  }
  func.func @transform_2(%arg0: i32) -> (i32, i32) {
    %c0_i32 = arith.constant 0 : i32
    %c0_i32_0 = arith.constant 0 : i32
    %c0_i32_1 = arith.constant 0 : i32
    return %c0_i32, %c0_i32_0 : i32, i32
  }
  func.func @transform_3(%arg0: i32) -> (i32, i32) {
    %c0_i32 = arith.constant 0 : i32
    %c0_i32_0 = arith.constant 0 : i32
    return %arg0, %c0_i32 : i32, i32
  }
}

</mosaic_0001>

<llo_original>
// kernel: _patch_embed_impl.1
$region0: #{_patch_embed_impl.1}
  #allocation0 [shape = 'u32[]', space=smem, size = 0x4, offset = 0x4, fixed_abs, tag = 'smem constant byte address 0x4 - core index']
  #allocation1 [shape = 'u32[144,128]{1,0:T(1,128)}', space=vmem, size = 0x12000, scoped, tag = 'internal scratch']
  %s0 = inlined_call_operand.vmem [shape: bf16[32,128], index: 0, kind: input, shape index: {}]
  %s1 = inlined_call_operand.vmem [shape: bf16[128,128], index: 1, kind: input, shape index: {}]
  %s2 = inlined_call_operand.vmem [shape: f32[1,128], index: 2, kind: input, shape index: {}]
  %s3 = inlined_call_operand.hbm [shape: bf16[32,128], index: 3, kind: output, shape index: {}]
  %s4 = sld [smem:[#allocation0]]
  $region45: #{_patch_embed_impl.1} parent=0
    _
  %s6 = ssub.s32 1, %s4
  %s7 = scalar_select 0, %s6, %s4
  $region1: #{_patch_embed_impl.1} parent=0
    #allocation2 [shape = 'u8[8192]{0}', space=vmem, size = 0x2000, scoped, tag = 'output window, operand 0']
    #allocation3 [shape = 's32[2]{0}', space=sflag, size = 0x8, scoped, tag = 'scoped memory for _patch_embed_impl.1']
    %8 = vsyncpa [#allocation3], 0
    %s9 = scalar_lea.sflag [#allocation3], 1
    %10 = vsyncpa %s9, 0
    loop: start=0, step=1, limit=4
    $region2: #{_patch_embed_impl.1} parent=1 // loop_pre_header
      _
    $region3: #{_patch_embed_impl.1} parent=1 // loop_header
      %s12 = sphi 0, %s16
      %p13 = scmp.ge.s32.totalorder %s12, 4
      %s22 = sphi 0, %s24
      %s25 = sphi 0, %s22
      %s26 = sphi 0, %s25
      %s42 = sphi 0, %s26
      %s46 = sphi 0, %s46
      %s48 = sphi 0, %s46
      %s49 = sphi 0, %s48
      %s63 = sphi 0, %s49
      %s67 = sphi 0, %s67
      %s69 = sphi 0, %s67
      %s70 = sphi 0, %s69
      %s84 = sphi 0, %s70
      %s90 = sphi 0, %s92
      %s93 = sphi 0, %s90
      %s94 = sphi 0, %s93
      %s110 = sphi 0, %s94
    $region4: #{_patch_embed_impl.1} parent=1 // loop_header_branch
      %15 = sbr.rel (%p13) target = $region8
    $region5: #{_patch_embed_impl.1} parent=1 // loop_body
      %s17 = ssub.s32 %s12, 1
      %s18 = ssub.s32 %s12, 2
      %s19 = sadd.s32 %s12, 1
      %s20 = ssub.s32 %s12, %s19
      %p21 = scmp.eq.s32.totalorder %s20, 0
      %s23 = sadd.s32 %s22, 1
      %s24 = scalar_select %p21, %s22, %s23
      %p27 = pneg %p21
      %p28 = scmp.eq.s32.totalorder %s12, 1
      %p29 = por %p27, %p28
      %p30 = scmp.ne.s32.totalorder %s22, %s25
      %p31 = scmp.eq.s32.totalorder %s12, 0
      %p32 = por %p30, %p31
      %p33 = scmp.ne.s32.totalorder %s22, %s25
      %p34 = scmp.eq.s32.totalorder %s17, 1
      %p35 = por %p33, %p34
      %p36 = scmp.ne.s32.totalorder %s25, %s26
      %p37 = scmp.eq.s32.totalorder %s17, 0
      %p38 = por %p36, %p37
      %p39 = scmp.ne.s32.totalorder %s25, %s26
      %p40 = scmp.eq.s32.totalorder %s18, 1
      %p41 = por %p39, %p40
      %p43 = scmp.ne.s32.totalorder %s26, %s42
      %p44 = scmp.eq.s32.totalorder %s18, 0
      %p45 = por %p43, %p44
      %s47 = sadd.s32 %s46, 1
      %p50 = scmp.eq.s32.totalorder %s12, 1
      %p51 = scmp.ne.s32.totalorder %s46, %s48
      %p52 = scmp.eq.s32.totalorder %s12, 0
      %p53 = por %p51, %p52
      %p54 = scmp.ne.s32.totalorder %s46, %s48
      %p55 = scmp.eq.s32.totalorder %s17, 1
      %p56 = por %p54, %p55
      %p57 = scmp.ne.s32.totalorder %s48, %s49
      %p58 = scmp.eq.s32.totalorder %s17, 0
      %p59 = por %p57, %p58
      %p60 = scmp.ne.s32.totalorder %s48, %s49
      %p61 = scmp.eq.s32.totalorder %s18, 1
      %p62 = por %p60, %p61
      %p64 = scmp.ne.s32.totalorder %s49, %s63
      %p65 = scmp.eq.s32.totalorder %s18, 0
      %p66 = por %p64, %p65
      %s68 = sadd.s32 %s67, 1
      %p71 = scmp.eq.s32.totalorder %s12, 1
      %p72 = scmp.ne.s32.totalorder %s67, %s69
      %p73 = scmp.eq.s32.totalorder %s12, 0
      %p74 = por %p72, %p73
      %p75 = scmp.ne.s32.totalorder %s67, %s69
      %p76 = scmp.eq.s32.totalorder %s17, 1
      %p77 = por %p75, %p76
      %p78 = scmp.ne.s32.totalorder %s69, %s70
      %p79 = scmp.eq.s32.totalorder %s17, 0
      %p80 = por %p78, %p79
      %p81 = scmp.ne.s32.totalorder %s69, %s70
      %p82 = scmp.eq.s32.totalorder %s18, 1
      %p83 = por %p81, %p82
      %p85 = scmp.ne.s32.totalorder %s70, %s84
      %p86 = scmp.eq.s32.totalorder %s18, 0
      %p87 = por %p85, %p86
      %s88 = ssub.s32 %s12, %s19
      %p89 = scmp.eq.s32.totalorder %s88, 0
      %s91 = sadd.s32 %s90, 1
      %s92 = scalar_select %p89, %s90, %s91
      %p95 = pneg %p89
      %p96 = scmp.eq.s32.totalorder %s12, 1
      %p97 = por %p95, %p96
      %p98 = scmp.ne.s32.totalorder %s90, %s93
      %p99 = scmp.eq.s32.totalorder %s12, 0
      %p100 = por %p98, %p99
      %p101 = scmp.ne.s32.totalorder %s90, %s93
      %p102 = scmp.eq.s32.totalorder %s17, 1
      %p103 = por %p101, %p102
      %p104 = scmp.ne.s32.totalorder %s93, %s94
      %p105 = scmp.eq.s32.totalorder %s17, 0
      %p106 = por %p104, %p105
      %p107 = scmp.ne.s32.totalorder %s93, %s94
      %p108 = scmp.eq.s32.totalorder %s18, 1
      %p109 = por %p107, %p108
      %p111 = scmp.ne.s32.totalorder %s94, %s110
      %p112 = scmp.eq.s32.totalorder %s18, 0
      %p113 = por %p111, %p112
      %p114 = scmp.le.s32.totalorder 1, %s12
      %p115 = scmp.lt.s32.totalorder %s12, 3
      %p116 = pnand %p114, %p115
      %p117 = pneg %p116
      // Predicated region
      $region9: #{_patch_embed_impl.1} parent=5 // pred_check
        _
      $region10: #{_patch_embed_impl.1} parent=5 // pred_check_branch
        %119 = sbr.rel (%p116) target = $region12
      $region11: #{_patch_embed_impl.1} parent=5 // pred_region
        %s120 = ssub.s32 %s12, 1
        // Predicated region
        $region13: #{_patch_embed_impl.1} parent=11 // pred_check
          %p121 = pneg %p59
        $region14: #{_patch_embed_impl.1} parent=11 // pred_check_branch
          %123 = sbr.rel (%p121) target = $region16
        $region15: #{_patch_embed_impl.1} parent=11 // pred_region
          _
        $region16: #{_patch_embed_impl.1} parent=11 // pred_fallthru
          _
        // Predicated region
        $region17: #{_patch_embed_impl.1} parent=11 // pred_check
          %p124 = pneg %p80
        $region18: #{_patch_embed_impl.1} parent=11 // pred_check_branch
          %126 = sbr.rel (%p124) target = $region20
        $region19: #{_patch_embed_impl.1} parent=11 // pred_region
          _
        $region20: #{_patch_embed_impl.1} parent=11 // pred_fallthru
          _
      $region12: #{_patch_embed_impl.1} parent=5 // pred_fallthru
        _
      %p127 = scmp.lt.s32.totalorder %s12, 2
      // Predicated region
      $region21: #{_patch_embed_impl.1} parent=5 // pred_check
        %p128 = pneg %p127
      $region22: #{_patch_embed_impl.1} parent=5 // pred_check_branch
        %130 = sbr.rel (%p128) target = $region24
      $region23: #{_patch_embed_impl.1} parent=5 // pred_region
        // Predicated region
        $region25: #{_patch_embed_impl.1} parent=23 // pred_check
          %p131 = pneg %p32
        $region26: #{_patch_embed_impl.1} parent=23 // pred_check_branch
          %133 = sbr.rel (%p131) target = $region28
        $region27: #{_patch_embed_impl.1} parent=23 // pred_region
          %s134 = smul.u32 2, %s12
          %p135 = scmp.lt.s32.totalorder %s134, 3
          %s136 = scalar_select %p135, %s134, 3
          %s137 = smul.addr %s136, 4
          %s138 = scalar_lea.vmem %s0, %s137
          %s139 = smul.u32 2, %s12
        $region28: #{_patch_embed_impl.1} parent=23 // pred_fallthru
          _
      $region24: #{_patch_embed_impl.1} parent=5 // pred_fallthru
        _
      %p140 = scmp.le.s32.totalorder 1, %s12
      %p141 = scmp.lt.s32.totalorder %s12, 3
      %p142 = pnand %p140, %p141
      %p143 = pneg %p142
      // Predicated region
      $region29: #{_patch_embed_impl.1} parent=5 // pred_check
        _
      $region30: #{_patch_embed_impl.1} parent=5 // pred_check_branch
        %145 = sbr.rel (%p142) target = $region32
      $region31: #{_patch_embed_impl.1} parent=5 // pred_region
        %s146 = ssub.s32 %s12, 1
        %s147 = smul.u32 2, %s17
        %p148 = scmp.lt.s32.totalorder %s147, 3
        %s149 = scalar_select %p148, %s147, 3
        %s150 = smul.addr %s149, 4
        %s151 = scalar_lea.vmem %s0, %s150
        %p152 = pneg %p38
        %p153 = pneg %p35
        %p154 = pneg %p59
        %p155 = pneg %p56
        %p156 = pneg %p80
        %p157 = pneg %p77
        %p158 = pneg %p106
        %p159 = pneg %p103
        %s160 = sand.u32 %s93, 1
        %s161 = scalar_lea.sflag [#allocation3], %s160
        %s162 = sand.u32 %s93, 1
        %s163 = smul.addr %s162, 8
        %s164 = scalar_lea.vmem [#allocation2], %s163
        %s165 = smul.u32 2, %s17
        %p166 = scmp.lt.s32.totalorder %s165, 3
        %s167 = scalar_select %p166, %s165, 3
        %s168 = smul.addr %s167, 4
        %s169 = scalar_lea.vmem %s0, %s168
        %s170 = smul.u32 2, %s17
        %s171 = smul.u32 2, %s17
        %v173 = vld [vmem:[%s169] sm:$0xf]
        %v174 = vld [vmem:[%s169 + $0x4] sm:$0xf]
        %v175 = vld [vmem:[%s1] sm:$0xf]
        %v176 = vld [vmem:[%s1 + $0x4] sm:$0xf]
        %v177 = vld [vmem:[%s1 + $0x8] sm:$0xf]
        %v178 = vld [vmem:[%s1 + $0xc] sm:$0xf]
        %v179 = vld [vmem:[%s1 + $0x10] sm:$0xf]
        %v180 = vld [vmem:[%s1 + $0x14] sm:$0xf]
        %v181 = vld [vmem:[%s1 + $0x18] sm:$0xf]
        %v182 = vld [vmem:[%s1 + $0x1c] sm:$0xf]
        %v183 = vld [vmem:[%s1 + $0x20] sm:$0xf]
        %v184 = vld [vmem:[%s1 + $0x24] sm:$0xf]
        %v185 = vld [vmem:[%s1 + $0x28] sm:$0xf]
        %v186 = vld [vmem:[%s1 + $0x2c] sm:$0xf]
        %v187 = vld [vmem:[%s1 + $0x30] sm:$0xf]
        %v188 = vld [vmem:[%s1 + $0x34] sm:$0xf]
        %v189 = vld [vmem:[%s1 + $0x38] sm:$0xf]
        %v190 = vld [vmem:[%s1 + $0x3c] sm:$0xf]
        %v191 = vld [vmem:[%s2] sm:$0x1]
        %v193 = vlaneseq
        %v194 = vshrl.u32 %v193, 7
        %v195 = vsub.s32 0, %v194
        %v196 = vrot.slane %v191, %v195
        %v200 = vunpack.c.l.b16 %v173
        %v201 = vunpack.c.l.b16 %v174
        %v202 = vpack.c.b16 %v201, %v200
        %v220 = vunpack.c.l.b16 %v175
        %v221 = vunpack.c.l.b16 %v176
        %v222 = vunpack.c.l.b16 %v177
        %v223 = vunpack.c.l.b16 %v178
        %v224 = vunpack.c.l.b16 %v179
        %v225 = vunpack.c.l.b16 %v180
        %v226 = vunpack.c.l.b16 %v181
        %v227 = vunpack.c.l.b16 %v182
        %v228 = vunpack.c.l.b16 %v183
        %v229 = vunpack.c.l.b16 %v184
        %v230 = vunpack.c.l.b16 %v185
        %v231 = vunpack.c.l.b16 %v186
        %v232 = vunpack.c.l.b16 %v187
        %v233 = vunpack.c.l.b16 %v188
        %v234 = vunpack.c.l.b16 %v189
        %v235 = vunpack.c.l.b16 %v190
        %v236 = vpack.c.b16 %v221, %v220
        %v237 = vpack.c.b16 %v223, %v222
        %v238 = vpack.c.b16 %v225, %v224
        %v239 = vpack.c.b16 %v227, %v226
        %v240 = vpack.c.b16 %v229, %v228
        %v241 = vpack.c.b16 %v231, %v230
        %v242 = vpack.c.b16 %v233, %v232
        %v243 = vpack.c.b16 %v235, %v234
        %252 = vmatprep.subr.bf16.mxu0 0
        %253 = vmatpush1.bf16.msra.mxu0 %v236
        %254 = vmatprep.subr.bf16.mxu0 0
        %255 = vmatpush1.bf16.msra.mxu0 %v237
        %256 = vmatprep.subr.bf16.mxu0 0
        %257 = vmatpush1.bf16.msra.mxu0 %v238
        %258 = vmatprep.subr.bf16.mxu0 0
        %259 = vmatpush1.bf16.msra.mxu0 %v239
        %260 = vmatprep.subr.bf16.mxu0 0
        %261 = vmatpush1.bf16.msra.mxu0 %v240
        %262 = vmatprep.subr.bf16.mxu0 0
        %263 = vmatpush1.bf16.msra.mxu0 %v241
        %264 = vmatprep.subr.bf16.mxu0 0
        %265 = vmatpush1.bf16.msra.mxu0 %v242
        %266 = vmatprep.subr.bf16.mxu0 0
        %267 = vmatpush1.bf16.msra.mxu0 %v243
        %268 = vmatprep.subr.bf16.mxu0 0
        %269 = vmatpush1.bf16.msra.mxu0 0
        %270 = vmatprep.subr.bf16.mxu0 0
        %271 = vmatpush1.bf16.msra.mxu0 0
        %272 = vmatprep.subr.bf16.mxu0 0
        %273 = vmatpush1.bf16.msra.mxu0 0
        %274 = vmatprep.subr.bf16.mxu0 0
        %275 = vmatpush1.bf16.msra.mxu0 0
        %276 = vmatprep.subr.bf16.mxu0 0
        %277 = vmatpush1.bf16.msra.mxu0 0
        %278 = vmatprep.subr.bf16.mxu0 0
        %279 = vmatpush1.bf16.msra.mxu0 0
        %280 = vmatprep.subr.bf16.mxu0 0
        %281 = vmatpush1.bf16.msra.mxu0 0
        %282 = vmatprep.subr.bf16.mxu0 0
        %283 = vmatpush1.bf16.msra.mxu0 0
        %284 = vmatprep.mubr.bf16.mxu0 0
        %285 = vmatmul.mubr.bf16.gmra.mrb[0].mxu0 %v202
        %v286 = vpop.f32.mrb[0].mxu0
        %v287 = vadd.f32 %v196, %v286
        %v288 = vpop.f32.mrb[0].mxu0
        %v289 = vpop.f32.mrb[0].mxu0
        %v290 = vadd.f32 %v196, %v289
        %v291 = vpop.f32.mrb[0].mxu0
        %292 = vdwg.mxu0
        %v293 = vpack.c.bf16 %v290, %v287
        %v295 = vunpack.c.l.b16 %v293
        %v296 = vunpack.c.h.b16 %v293
        %v297 = vpack.c.b16 %v295, %v295
        %v298 = vpack.c.b16 %v296, %v296
        %301 = vst [vmem:[%s164] sm:$0xf] %v297
        %302 = vst [vmem:[%s164 + $0x4] sm:$0xf] %v298
        %s303 = sand.u32 %s93, 1
        %s304 = scalar_lea.sflag [#allocation3], %s303
        %s305 = sand.u32 %s93, 1
        %s306 = smul.addr %s305, 8
        %s307 = scalar_lea.vmem [#allocation2], %s306
        // Predicated region
        $region33: #{_patch_embed_impl.1} parent=31 // pred_check
          %p308 = pneg %p103
        $region34: #{_patch_embed_impl.1} parent=31 // pred_check_branch
          %310 = sbr.rel (%p308) target = $region36
        $region35: #{_patch_embed_impl.1} parent=31 // pred_region
          %s311 = smul.u32 2, %s17
          %s313 = ssub.s32 128, 128
          %314 = vsyncadd %s304, %s313
          %s315 = smul.addr %s311, 64
          %s316 = scalar_lea.hbm %s3, %s315
          %s317 = sshll.u32 %s307, 4
          %s318 = int_to_ptr.vmem [resolvable:$true] %s317
          %323 = dma.vmem_to_hbm [thread:$0]  %s318, 128, %s316, %s304, 64, 64, 4
        $region36: #{_patch_embed_impl.1} parent=31 // pred_fallthru
          _
      $region32: #{_patch_embed_impl.1} parent=5 // pred_fallthru
        _
      %p324 = scmp.le.s32.totalorder 2, %s12
      // Predicated region
      $region37: #{_patch_embed_impl.1} parent=5 // pred_check
        %p325 = pneg %p324
      $region38: #{_patch_embed_impl.1} parent=5 // pred_check_branch
        %327 = sbr.rel (%p325) target = $region40
      $region39: #{_patch_embed_impl.1} parent=5 // pred_region
        %s328 = ssub.s32 %s12, 2
        // Predicated region
        $region41: #{_patch_embed_impl.1} parent=39 // pred_check
          %p329 = pneg %p109
        $region42: #{_patch_embed_impl.1} parent=39 // pred_check_branch
          %331 = sbr.rel (%p329) target = $region44
        $region43: #{_patch_embed_impl.1} parent=39 // pred_region
          %s332 = sand.u32 %s94, 1
          %s333 = scalar_lea.sflag [#allocation3], %s332
          %s334 = sand.u32 %s94, 1
          %s335 = smul.addr %s334, 8
          %s336 = scalar_lea.vmem [#allocation2], %s335
          %337 = dma.done %s333, 128
        $region44: #{_patch_embed_impl.1} parent=39 // pred_fallthru
          _
      $region40: #{_patch_embed_impl.1} parent=5 // pred_fallthru
        _
    $region6: #{_patch_embed_impl.1} parent=1 // loop_footer
      %s16 = sadd.s32 1, %s12
    $region7: #{_patch_embed_impl.1} parent=1 // loop_footer_branch
      %11 = sbr.rel target = $region3
    $region8: #{_patch_embed_impl.1} parent=1 // loop_exit
      _
    %338 = vsyncpa [#allocation3], 1
    %s339 = scalar_lea.sflag [#allocation3], 1
    %340 = vsyncpa %s339, 1

// kernel: _patch_embed_impl.1
$region0: #{_patch_embed_impl.1}
  #allocation0 [shape = 'u32[]', space=smem, size = 0x4, offset = 0x4, fixed_abs, tag = 'smem constant byte address 0x4 - core index']
  #allocation1 [shape = 'u32[144,128]{1,0:T(1,128)}', space=vmem, size = 0x12000, scoped, tag = 'internal scratch']
  %s0 = inlined_call_operand.vmem [shape: bf16[32,128], index: 0, kind: input, shape index: {}]
  %s1 = inlined_call_operand.vmem [shape: bf16[128,128], index: 1, kind: input, shape index: {}]
  %s2 = inlined_call_operand.vmem [shape: f32[1,128], index: 2, kind: input, shape index: {}]
  %s3 = inlined_call_operand.hbm [shape: bf16[32,128], index: 3, kind: output, shape index: {}]
  %s4 = sld [smem:[#allocation0]]
  $region45: #{_patch_embed_impl.1} parent=0
    _
  %s6 = ssub.s32 1, %s4
  %s7 = scalar_select 0, %s6, %s4
  $region1: #{_patch_embed_impl.1} parent=0
    #allocation2 [shape = 'u8[8192]{0}', space=vmem, size = 0x2000, scoped, tag = 'output window, operand 0']
    #allocation3 [shape = 's32[2]{0}', space=sflag, size = 0x8, scoped, tag = 'scoped memory for _patch_embed_impl.1']
    %8 = vsyncpa [#allocation3], 0
    %s9 = scalar_lea.sflag [#allocation3], 1
    %10 = vsyncpa %s9, 0
    loop: start=0, step=1, limit=4
    $region2: #{_patch_embed_impl.1} parent=1 // loop_pre_header
      _
    $region3: #{_patch_embed_impl.1} parent=1 // loop_header
      %s12 = sphi 0, %s16
      %p13 = scmp.ge.s32.totalorder %s12, 4
      %s22 = sphi 0, %s24
      %s25 = sphi 0, %s22
      %s26 = sphi 0, %s25
      %s42 = sphi 0, %s26
      %s46 = sphi 0, %s46
      %s48 = sphi 0, %s46
      %s49 = sphi 0, %s48
      %s63 = sphi 0, %s49
      %s67 = sphi 0, %s67
      %s69 = sphi 0, %s67
      %s70 = sphi 0, %s69
      %s84 = sphi 0, %s70
      %s90 = sphi 0, %s92
      %s93 = sphi 0, %s90
      %s94 = sphi 0, %s93
      %s110 = sphi 0, %s94
    $region4: #{_patch_embed_impl.1} parent=1 // loop_header_branch
      %15 = sbr.rel (%p13) target = $region8
    $region5: #{_patch_embed_impl.1} parent=1 // loop_body
      %s17 = ssub.s32 %s12, 1
      %s18 = ssub.s32 %s12, 2
      %s19 = sadd.s32 %s12, 1
      %s20 = ssub.s32 %s12, %s19
      %p21 = scmp.eq.s32.totalorder %s20, 0
      %s23 = sadd.s32 %s22, 1
      %s24 = scalar_select %p21, %s22, %s23
      %p27 = pneg %p21
      %p28 = scmp.eq.s32.totalorder %s12, 1
      %p29 = por %p27, %p28
      %p30 = scmp.ne.s32.totalorder %s22, %s25
      %p31 = scmp.eq.s32.totalorder %s12, 0
      %p32 = por %p30, %p31
      %p33 = scmp.ne.s32.totalorder %s22, %s25
      %p34 = scmp.eq.s32.totalorder %s17, 1
      %p35 = por %p33, %p34
      %p36 = scmp.ne.s32.totalorder %s25, %s26
      %p37 = scmp.eq.s32.totalorder %s17, 0
      %p38 = por %p36, %p37
      %p39 = scmp.ne.s32.totalorder %s25, %s26
      %p40 = scmp.eq.s32.totalorder %s18, 1
      %p41 = por %p39, %p40
      %p43 = scmp.ne.s32.totalorder %s26, %s42
      %p44 = scmp.eq.s32.totalorder %s18, 0
      %p45 = por %p43, %p44
      %s47 = sadd.s32 %s46, 1
      %p50 = scmp.eq.s32.totalorder %s12, 1
      %p51 = scmp.ne.s32.totalorder %s46, %s48
      %p52 = scmp.eq.s32.totalorder %s12, 0
      %p53 = por %p51, %p52
      %p54 = scmp.ne.s32.totalorder %s46, %s48
      %p55 = scmp.eq.s32.totalorder %s17, 1
      %p56 = por %p54, %p55
      %p57 = scmp.ne.s32.totalorder %s48, %s49
      %p58 = scmp.eq.s32.totalorder %s17, 0
      %p59 = por %p57, %p58
      %p60 = scmp.ne.s32.totalorder %s48, %s49
      %p61 = scmp.eq.s32.totalorder %s18, 1
      %p62 = por %p60, %p61
      %p64 = scmp.ne.s32.totalorder %s49, %s63
      %p65 = scmp.eq.s32.totalorder %s18, 0
      %p66 = por %p64, %p65
      %s68 = sadd.s32 %s67, 1
      %p71 = scmp.eq.s32.totalorder %s12, 1
      %p72 = scmp.ne.s32.totalorder %s67, %s69
      %p73 = scmp.eq.s32.totalorder %s12, 0
      %p74 = por %p72, %p73
      %p75 = scmp.ne.s32.totalorder %s67, %s69
      %p76 = scmp.eq.s32.totalorder %s17, 1
      %p77 = por %p75, %p76
      %p78 = scmp.ne.s32.totalorder %s69, %s70
      %p79 = scmp.eq.s32.totalorder %s17, 0
      %p80 = por %p78, %p79
      %p81 = scmp.ne.s32.totalorder %s69, %s70
      %p82 = scmp.eq.s32.totalorder %s18, 1
      %p83 = por %p81, %p82
      %p85 = scmp.ne.s32.totalorder %s70, %s84
      %p86 = scmp.eq.s32.totalorder %s18, 0
      %p87 = por %p85, %p86
      %s88 = ssub.s32 %s12, %s19
      %p89 = scmp.eq.s32.totalorder %s88, 0
      %s91 = sadd.s32 %s90, 1
      %s92 = scalar_select %p89, %s90, %s91
      %p95 = pneg %p89
      %p96 = scmp.eq.s32.totalorder %s12, 1
      %p97 = por %p95, %p96
      %p98 = scmp.ne.s32.totalorder %s90, %s93
      %p99 = scmp.eq.s32.totalorder %s12, 0
      %p100 = por %p98, %p99
      %p101 = scmp.ne.s32.totalorder %s90, %s93
      %p102 = scmp.eq.s32.totalorder %s17, 1
      %p103 = por %p101, %p102
      %p104 = scmp.ne.s32.totalorder %s93, %s94
      %p105 = scmp.eq.s32.totalorder %s17, 0
      %p106 = por %p104, %p105
      %p107 = scmp.ne.s32.totalorder %s93, %s94
      %p108 = scmp.eq.s32.totalorder %s18, 1
      %p109 = por %p107, %p108
      %p111 = scmp.ne.s32.totalorder %s94, %s110
      %p112 = scmp.eq.s32.totalorder %s18, 0
      %p113 = por %p111, %p112
      %p114 = scmp.le.s32.totalorder 1, %s12
      %p115 = scmp.lt.s32.totalorder %s12, 3
      %p116 = pnand %p114, %p115
      %p117 = pneg %p116
      // Predicated region
      $region9: #{_patch_embed_impl.1} parent=5 // pred_check
        _
      $region10: #{_patch_embed_impl.1} parent=5 // pred_check_branch
        %119 = sbr.rel (%p116) target = $region12
      $region11: #{_patch_embed_impl.1} parent=5 // pred_region
        %s120 = ssub.s32 %s12, 1
        // Predicated region
        $region13: #{_patch_embed_impl.1} parent=11 // pred_check
          %p121 = pneg %p59
        $region14: #{_patch_embed_impl.1} parent=11 // pred_check_branch
          %123 = sbr.rel (%p121) target = $region16
        $region15: #{_patch_embed_impl.1} parent=11 // pred_region
          _
        $region16: #{_patch_embed_impl.1} parent=11 // pred_fallthru
          _
        // Predicated region
        $region17: #{_patch_embed_impl.1} parent=11 // pred_check
          %p124 = pneg %p80
        $region18: #{_patch_embed_impl.1} parent=11 // pred_check_branch
          %126 = sbr.rel (%p124) target = $region20
        $region19: #{_patch_embed_impl.1} parent=11 // pred_region
          _
        $region20: #{_patch_embed_impl.1} parent=11 // pred_fallthru
          _
      $region12: #{_patch_embed_impl.1} parent=5 // pred_fallthru
        _
      %p127 = scmp.lt.s32.totalorder %s12, 2
      // Predicated region
      $region21: #{_patch_embed_impl.1} parent=5 // pred_check
        %p128 = pneg %p127
      $region22: #{_patch_embed_impl.1} parent=5 // pred_check_branch
        %130 = sbr.rel (%p128) target = $region24
      $region23: #{_patch_embed_impl.1} parent=5 // pred_region
        // Predicated region
        $region25: #{_patch_embed_impl.1} parent=23 // pred_check
          %p131 = pneg %p32
        $region26: #{_patch_embed_impl.1} parent=23 // pred_check_branch
          %133 = sbr.rel (%p131) target = $region28
        $region27: #{_patch_embed_impl.1} parent=23 // pred_region
          %s134 = smul.u32 2, %s12
          %p135 = scmp.lt.s32.totalorder %s134, 3
          %s136 = scalar_select %p135, %s134, 3
          %s137 = smul.addr %s136, 4
          %s138 = scalar_lea.vmem %s0, %s137
          %s139 = smul.u32 2, %s12
        $region28: #{_patch_embed_impl.1} parent=23 // pred_fallthru
          _
      $region24: #{_patch_embed_impl.1} parent=5 // pred_fallthru
        _
      %p140 = scmp.le.s32.totalorder 1, %s12
      %p141 = scmp.lt.s32.totalorder %s12, 3
      %p142 = pnand %p140, %p141
      %p143 = pneg %p142
      // Predicated region
      $region29: #{_patch_embed_impl.1} parent=5 // pred_check
        _
      $region30: #{_patch_embed_impl.1} parent=5 // pred_check_branch
        %145 = sbr.rel (%p142) target = $region32
      $region31: #{_patch_embed_impl.1} parent=5 // pred_region
        %s146 = ssub.s32 %s12, 1
        %s147 = smul.u32 2, %s17
        %p148 = scmp.lt.s32.totalorder %s147, 3
        %s149 = scalar_select %p148, %s147, 3
        %s150 = smul.addr %s149, 4
        %s151 = scalar_lea.vmem %s0, %s150
        %p152 = pneg %p38
        %p153 = pneg %p35
        %p154 = pneg %p59
        %p155 = pneg %p56
        %p156 = pneg %p80
        %p157 = pneg %p77
        %p158 = pneg %p106
        %p159 = pneg %p103
        %s160 = sand.u32 %s93, 1
        %s161 = scalar_lea.sflag [#allocation3], %s160
        %s162 = sand.u32 %s93, 1
        %s163 = smul.addr %s162, 8
        %s164 = scalar_lea.vmem [#allocation2], %s163
        %s165 = smul.u32 2, %s17
        %p166 = scmp.lt.s32.totalorder %s165, 3
        %s167 = scalar_select %p166, %s165, 3
        %s168 = smul.addr %s167, 4
        %s169 = scalar_lea.vmem %s0, %s168
        %s170 = smul.u32 2, %s17
        %s171 = smul.u32 2, %s17
        %v173 = vld [vmem:[%s169] sm:$0xf]
        %v174 = vld [vmem:[%s169 + $0x4] sm:$0xf]
        %v175 = vld [vmem:[%s1] sm:$0xf]
        %v176 = vld [vmem:[%s1 + $0x4] sm:$0xf]
        %v177 = vld [vmem:[%s1 + $0x8] sm:$0xf]
        %v178 = vld [vmem:[%s1 + $0xc] sm:$0xf]
        %v179 = vld [vmem:[%s1 + $0x10] sm:$0xf]
        %v180 = vld [vmem:[%s1 + $0x14] sm:$0xf]
        %v181 = vld [vmem:[%s1 + $0x18] sm:$0xf]
        %v182 = vld [vmem:[%s1 + $0x1c] sm:$0xf]
        %v183 = vld [vmem:[%s1 + $0x20] sm:$0xf]
        %v184 = vld [vmem:[%s1 + $0x24] sm:$0xf]
        %v185 = vld [vmem:[%s1 + $0x28] sm:$0xf]
        %v186 = vld [vmem:[%s1 + $0x2c] sm:$0xf]
        %v187 = vld [vmem:[%s1 + $0x30] sm:$0xf]
        %v188 = vld [vmem:[%s1 + $0x34] sm:$0xf]
        %v189 = vld [vmem:[%s1 + $0x38] sm:$0xf]
        %v190 = vld [vmem:[%s1 + $0x3c] sm:$0xf]
        %v191 = vld [vmem:[%s2] sm:$0x1]
        %v193 = vlaneseq
        %v194 = vshrl.u32 %v193, 7
        %v195 = vsub.s32 0, %v194
        %v196 = vrot.slane %v191, %v195
        %v200 = vunpack.c.l.b16 %v173
        %v201 = vunpack.c.l.b16 %v174
        %v202 = vpack.c.b16 %v201, %v200
        %v220 = vunpack.c.l.b16 %v175
        %v221 = vunpack.c.l.b16 %v176
        %v222 = vunpack.c.l.b16 %v177
        %v223 = vunpack.c.l.b16 %v178
        %v224 = vunpack.c.l.b16 %v179
        %v225 = vunpack.c.l.b16 %v180
        %v226 = vunpack.c.l.b16 %v181
        %v227 = vunpack.c.l.b16 %v182
        %v228 = vunpack.c.l.b16 %v183
        %v229 = vunpack.c.l.b16 %v184
        %v230 = vunpack.c.l.b16 %v185
        %v231 = vunpack.c.l.b16 %v186
        %v232 = vunpack.c.l.b16 %v187
        %v233 = vunpack.c.l.b16 %v188
        %v234 = vunpack.c.l.b16 %v189
        %v235 = vunpack.c.l.b16 %v190
        %v236 = vpack.c.b16 %v221, %v220
        %v237 = vpack.c.b16 %v223, %v222
        %v238 = vpack.c.b16 %v225, %v224
        %v239 = vpack.c.b16 %v227, %v226
        %v240 = vpack.c.b16 %v229, %v228
        %v241 = vpack.c.b16 %v231, %v230
        %v242 = vpack.c.b16 %v233, %v232
        %v243 = vpack.c.b16 %v235, %v234
        %252 = vmatprep.subr.bf16.mxu0 0
        %253 = vmatpush1.bf16.msra.mxu0 %v236
        %254 = vmatprep.subr.bf16.mxu0 0
        %255 = vmatpush1.bf16.msra.mxu0 %v237
        %256 = vmatprep.subr.bf16.mxu0 0
        %257 = vmatpush1.bf16.msra.mxu0 %v238
        %258 = vmatprep.subr.bf16.mxu0 0
        %259 = vmatpush1.bf16.msra.mxu0 %v239
        %260 = vmatprep.subr.bf16.mxu0 0
        %261 = vmatpush1.bf16.msra.mxu0 %v240
        %262 = vmatprep.subr.bf16.mxu0 0
        %263 = vmatpush1.bf16.msra.mxu0 %v241
        %264 = vmatprep.subr.bf16.mxu0 0
        %265 = vmatpush1.bf16.msra.mxu0 %v242
        %266 = vmatprep.subr.bf16.mxu0 0
        %267 = vmatpush1.bf16.msra.mxu0 %v243
        %268 = vmatprep.subr.bf16.mxu0 0
        %269 = vmatpush1.bf16.msra.mxu0 0
        %270 = vmatprep.subr.bf16.mxu0 0
        %271 = vmatpush1.bf16.msra.mxu0 0
        %272 = vmatprep.subr.bf16.mxu0 0
        %273 = vmatpush1.bf16.msra.mxu0 0
        %274 = vmatprep.subr.bf16.mxu0 0
        %275 = vmatpush1.bf16.msra.mxu0 0
        %276 = vmatprep.subr.bf16.mxu0 0
        %277 = vmatpush1.bf16.msra.mxu0 0
        %278 = vmatprep.subr.bf16.mxu0 0
        %279 = vmatpush1.bf16.msra.mxu0 0
        %280 = vmatprep.subr.bf16.mxu0 0
        %281 = vmatpush1.bf16.msra.mxu0 0
        %282 = vmatprep.subr.bf16.mxu0 0
        %283 = vmatpush1.bf16.msra.mxu0 0
        %284 = vmatprep.mubr.bf16.mxu0 0
        %285 = vmatmul.mubr.bf16.gmra.mrb[0].mxu0 %v202
        %v286 = vpop.f32.mrb[0].mxu0
        %v287 = vadd.f32 %v196, %v286
        %v288 = vpop.f32.mrb[0].mxu0
        %v289 = vpop.f32.mrb[0].mxu0
        %v290 = vadd.f32 %v196, %v289
        %v291 = vpop.f32.mrb[0].mxu0
        %292 = vdwg.mxu0
        %v293 = vpack.c.bf16 %v290, %v287
        %v295 = vunpack.c.l.b16 %v293
        %v296 = vunpack.c.h.b16 %v293
        %v297 = vpack.c.b16 %v295, %v295
        %v298 = vpack.c.b16 %v296, %v296
        %301 = vst [vmem:[%s164] sm:$0xf] %v297
        %302 = vst [vmem:[%s164 + $0x4] sm:$0xf] %v298
        %s303 = sand.u32 %s93, 1
        %s304 = scalar_lea.sflag [#allocation3], %s303
        %s305 = sand.u32 %s93, 1
        %s306 = smul.addr %s305, 8
        %s307 = scalar_lea.vmem [#allocation2], %s306
        // Predicated region
        $region33: #{_patch_embed_impl.1} parent=31 // pred_check
          %p308 = pneg %p103
        $region34: #{_patch_embed_impl.1} parent=31 // pred_check_branch
          %310 = sbr.rel (%p308) target = $region36
        $region35: #{_patch_embed_impl.1} parent=31 // pred_region
          %s311 = smul.u32 2, %s17
          %s313 = ssub.s32 128, 128
          %314 = vsyncadd %s304, %s313
          %s315 = smul.addr %s311, 64
          %s316 = scalar_lea.hbm %s3, %s315
          %s317 = sshll.u32 %s307, 4
          %s318 = int_to_ptr.vmem [resolvable:$true] %s317
          %323 = dma.vmem_to_hbm [thread:$0]  %s318, 128, %s316, %s304, 64, 64, 4
        $region36: #{_patch_embed_impl.1} parent=31 // pred_fallthru
          _
      $region32: #{_patch_embed_impl.1} parent=5 // pred_fallthru
        _
      %p324 = scmp.le.s32.totalorder 2, %s12
      // Predicated region
      $region37: #{_patch_embed_impl.1} parent=5 // pred_check
        %p325 = pneg %p324
      $region38: #{_patch_embed_impl.1} parent=5 // pred_check_branch
        %327 = sbr.rel (%p325) target = $region40
      $region39: #{_patch_embed_impl.1} parent=5 // pred_region
        %s328 = ssub.s32 %s12, 2
        // Predicated region
        $region41: #{_patch_embed_impl.1} parent=39 // pred_check
          %p329 = pneg %p109
        $region42: #{_patch_embed_impl.1} parent=39 // pred_check_branch
          %331 = sbr.rel (%p329) target = $region44
        $region43: #{_patch_embed_impl.1} parent=39 // pred_region
          %s332 = sand.u32 %s94, 1
          %s333 = scalar_lea.sflag [#allocation3], %s332
          %s334 = sand.u32 %s94, 1
          %s335 = smul.addr %s334, 8
          %s336 = scalar_lea.vmem [#allocation2], %s335
          %337 = dma.done %s333, 128
        $region44: #{_patch_embed_impl.1} parent=39 // pred_fallthru
          _
      $region40: #{_patch_embed_impl.1} parent=5 // pred_fallthru
        _
    $region6: #{_patch_embed_impl.1} parent=1 // loop_footer
      %s16 = sadd.s32 1, %s12
    $region7: #{_patch_embed_impl.1} parent=1 // loop_footer_branch
      %11 = sbr.rel target = $region3
    $region8: #{_patch_embed_impl.1} parent=1 // loop_exit
      _
    %338 = vsyncpa [#allocation3], 1
    %s339 = scalar_lea.sflag [#allocation3], 1
    %340 = vsyncpa %s339, 1

</llo_original>
